<compile_context>
chip_gen: v7x
topology: tpu7x:2x2x1
jax: 0.10.0
libtpu: 0.0.40
codegen_flags: <defaults>
</compile_context>

<pallas_src>
import functools

import jax
import jax.numpy as jnp
from jax.experimental import pallas as pl
from jax.experimental.pallas import tpu as pltpu


# ---------------------------------------------------------------------------
# Pallas kernel: tiled matmul + fused bias epilogue
# ---------------------------------------------------------------------------
def _linear_kernel(x_ref, w_ref, b_ref, o_ref, acc_ref):
    k = pl.program_id(2)

    @pl.when(k == 0)
    def _():
        acc_ref[...] = jnp.zeros_like(acc_ref)

    acc_ref[...] += jnp.dot(
        x_ref[...], w_ref[...], preferred_element_type=jnp.float32
    )

    @pl.when(k == pl.num_programs(2) - 1)
    def _():
        # Bias add stays on the f32 accumulator (VPU slot is free while MXU binds).
        o_ref[...] = (acc_ref[...] + b_ref[...].astype(jnp.float32)).astype(o_ref.dtype)


def _pick_tile(dim, candidates):
    for t in candidates:
        if t <= dim and dim % t == 0:
            return t
    return dim  # fall back to full extent (always legal for BlockSpec)


def pallas_linear(x, w, b, *, out_dtype=jnp.float32):
    """y = x @ w + b as a tiled, pipelined Pallas TPU kernel.

    x: (M, K), w: (K, N) (pre-transposed weight), b: (1, N).
    Accumulation is float32 regardless of operand dtype.
    """
    M, K = x.shape
    K2, N = w.shape
    assert K == K2 and b.shape == (1, N)

    # Tile sizes: 256-aligned preferred (v6e/v7x MXU), 128 ok (v5e); tiles are
    # small enough (<8 MiB total double-buffered) to fit the 32 MiB scoped VMEM
    # budget that also holds on v7x's 64 MiB physical VMEM.
    tm = _pick_tile(M, (512, 256, 128, 64, 32, 16, 8))
    tn = _pick_tile(N, (512, 256, 128))
    tk = _pick_tile(K, (1024, 512, 256, 128))
    grid = (M // tm, N // tn, K // tk)

    out_itemsize = jnp.dtype(out_dtype).itemsize
    cost = pl.CostEstimate(
        flops=2 * M * N * K,
        transcendentals=0,
        bytes_accessed=(
            M * K * x.dtype.itemsize
            + K * N * w.dtype.itemsize
            + N * b.dtype.itemsize
            + M * N * out_itemsize
        ),
    )

    return pl.pallas_call(
        _linear_kernel,
        out_shape=jax.ShapeDtypeStruct((M, N), out_dtype),
        grid_spec=pltpu.PrefetchScalarGridSpec(
            num_scalar_prefetch=0,
            grid=grid,
            in_specs=[
                pl.BlockSpec((tm, tk), lambda i, j, k: (i, k)),
                pl.BlockSpec((tk, tn), lambda i, j, k: (k, j)),
                pl.BlockSpec((1, tn), lambda i, j, k: (0, j)),
            ],
            out_specs=pl.BlockSpec((tm, tn), lambda i, j, k: (i, j)),
            scratch_shapes=[pltpu.VMEM((tm, tn), jnp.float32)],
        ),
        compiler_params=pltpu.CompilerParams(
            dimension_semantics=("parallel", "parallel", "arbitrary"),
            vmem_limit_bytes=32 * 1024 * 1024,
        ),
        cost_estimate=cost,
    )(x, w, b)


@jax.jit
def _linear_forward(x, w_kn, b):
    # Cast activations to bf16 inside the jit so XLA fuses it with dispatch.
    return pallas_linear(x.astype(jnp.bfloat16), w_kn, b)


# ---------------------------------------------------------------------------
# Inner "module": a Linear layer backed by the Pallas kernel
# ---------------------------------------------------------------------------
class PallasLinear:
    def __init__(self, in_features, out_features, key):
        kw, kb = jax.random.split(key)
        bound = 1.0 / (in_features ** 0.5)
        # nn.Linear-style init; weight kept pre-transposed as (K, N) in bf16 so
        # the hot path has no per-call transpose and runs at MXU bf16 peak.
        w = jax.random.uniform(
            kw, (out_features, in_features), jnp.float32, -bound, bound
        )
        b = jax.random.uniform(kb, (out_features,), jnp.float32, -bound, bound)
        self.weight_kn = jnp.asarray(w.T, dtype=jnp.bfloat16)   # (K, N)
        self.bias = b.reshape(1, out_features)                  # (1, N) f32

    def params_to_device(self, device):
        # Commit parameters once; no per-call device_put of weights.
        self.weight_kn = jax.device_put(self.weight_kn, device)
        self.bias = jax.device_put(self.bias, device)

    def __call__(self, x):
        # x: (M, in_features) -> (M, out_features), f32 output, f32 accumulation.
        return _linear_forward(x, self.weight_kn, self.bias)


# ---------------------------------------------------------------------------
# WithDevice: faithful port of the PyTorch wrapper semantics
# ---------------------------------------------------------------------------
class WithDevice:
    """Wraps a module and a device; forward simply delegates to the module."""

    def __init__(self, module, device: jax.Device):
        self._module = module
        self._device = device
        # The stored device is partitioner metadata; honor it by committing the
        # wrapped module's parameters to that device once, at construction.
        if hasattr(module, "params_to_device"):
            module.params_to_device(device)

    def __call__(self, *args, **kwargs):
        # Forward semantics: identical to the wrapped module's forward.
        # device_put is a no-op if the input is already resident on the device.
        args = tuple(
            jax.device_put(a, self._device) if isinstance(a, jax.Array) else a
            for a in args
        )
        return self._module(*args, **kwargs)

    @property
    def module(self):
        return self._module

    @property
    def device(self):
        return self._device


if __name__ == "__main__":
    key = jax.random.PRNGKey(0)
    k_in, k_mod = jax.random.split(key)

    # Small but lane-dense demo shapes: M = batch*seq = 16, K = N = hidden = 256.
    batch, seq, hidden = 2, 8, 256
    x = jax.random.normal(k_in, (batch * seq, hidden), jnp.float32)

    inner = PallasLinear(hidden, hidden, k_mod)
    wrapped = WithDevice(inner, jax.devices()[0])

    y = jax.block_until_ready(wrapped(x))

    # Reference: same bf16-rounded operands, math in f32.
    x_bf = x.astype(jnp.bfloat16).astype(jnp.float32)
    w_f = inner.weight_kn.astype(jnp.float32)
    y_ref = x_bf @ w_f + inner.bias

    assert y.shape == (batch * seq, hidden)
    assert y.dtype == jnp.float32
    assert jnp.allclose(y, y_ref, atol=2e-2, rtol=2e-2)

    print("KERNEL_OK")
</pallas_src>

<mosaic_0001>
module attributes {stable_mosaic.version = 11 : i64} {
  func.func @_linear_kernel(%arg0: i32, %arg1: i32, %arg2: i32, %arg3: memref<16x256xbf16, #tpu.memory_space<vmem>>, %arg4: memref<256x256xbf16, #tpu.memory_space<vmem>>, %arg5: memref<1x256xf32, #tpu.memory_space<vmem>>, %arg6: memref<16x256xf32, #tpu.memory_space<vmem>>, %arg7: memref<16x256xf32, #tpu.memory_space<vmem>>) attributes {dimension_semantics = [#tpu.dimension_semantics<parallel>, #tpu.dimension_semantics<parallel>, #tpu.dimension_semantics<arbitrary>], iteration_bounds = array<i64: 1, 1, 1>, scalar_prefetch = 0 : i64, scratch_operands = 1 : i64, tpu.core_type = #tpu.core_type<tc>, window_params = [{transform_indices = @transform_0, window_bounds = array<i64: 16, 256>}, {transform_indices = @transform_1, window_bounds = array<i64: 256, 256>}, {transform_indices = @transform_2, window_bounds = array<i64: 1, 256>}, {transform_indices = @transform_3, window_bounds = array<i64: 16, 256>}]} {
    %c0_i32 = arith.constant 0 : i32
    %0 = arith.cmpi eq, %arg2, %c0_i32 : i32
    %1 = arith.extui %0 : i1 to i32
    %c0_i32_0 = arith.constant 0 : i32
    %2 = arith.cmpi ne, %1, %c0_i32_0 : i32
    scf.if %2 {
      %cst_10 = arith.constant 0.000000e+00 : f32
      %12 = vector.broadcast %cst_10 : f32 to vector<16x256xf32>
      %c0_11 = arith.constant 0 : index
      %c0_12 = arith.constant 0 : index
      %13 = vector.load %arg7[%c0_11, %c0_12] : memref<16x256xf32, #tpu.memory_space<vmem>>, vector<16x256xf32>
      tpu.vector_store %arg7[%c0_11, %c0_12], %12 {strides = array<i32>} : memref<16x256xf32, #tpu.memory_space<vmem>>, vector<16x256xf32>,
    } else {
    }
    %c0 = arith.constant 0 : index
    %c0_1 = arith.constant 0 : index
    %3 = vector.load %arg7[%c0, %c0_1] : memref<16x256xf32, #tpu.memory_space<vmem>>, vector<16x256xf32>
    %c0_2 = arith.constant 0 : index
    %c0_3 = arith.constant 0 : index
    %4 = vector.load %arg3[%c0_2, %c0_3] : memref<16x256xbf16, #tpu.memory_space<vmem>>, vector<16x256xbf16>
    %c0_4 = arith.constant 0 : index
    %c0_5 = arith.constant 0 : index
    %5 = vector.load %arg4[%c0_4, %c0_5] : memref<256x256xbf16, #tpu.memory_space<vmem>>, vector<256x256xbf16>
    %cst = arith.constant dense<0.000000e+00> : vector<16x256xf32>
    %6 = tpu.matmul %4, %5, %cst {dimension_numbers = #tpu.dot_dimension_numbers<[1], [0], [0], [1], [0, 0, 1, 1], [], []>} : vector<16x256xbf16>, vector<256x256xbf16>, vector<16x256xf32> -> vector<16x256xf32>
    %7 = arith.addf %3, %6 : vector<16x256xf32>
    %c0_6 = arith.constant 0 : index
    %c0_7 = arith.constant 0 : index
    %8 = vector.load %arg7[%c0_6, %c0_7] : memref<16x256xf32, #tpu.memory_space<vmem>>, vector<16x256xf32>
    tpu.vector_store %arg7[%c0_6, %c0_7], %7 {strides = array<i32>} : memref<16x256xf32, #tpu.memory_space<vmem>>, vector<16x256xf32>,
    %c0_i32_8 = arith.constant 0 : i32
    %9 = arith.cmpi eq, %arg2, %c0_i32_8 : i32
    %10 = arith.extui %9 : i1 to i32
    %c0_i32_9 = arith.constant 0 : i32
    %11 = arith.cmpi ne, %10, %c0_i32_9 : i32
    scf.if %11 {
      %c0_10 = arith.constant 0 : index
      %c0_11 = arith.constant 0 : index
      %12 = vector.load %arg7[%c0_10, %c0_11] : memref<16x256xf32, #tpu.memory_space<vmem>>, vector<16x256xf32>
      %c0_12 = arith.constant 0 : index
      %c0_13 = arith.constant 0 : index
      %13 = vector.load %arg5[%c0_12, %c0_13] : memref<1x256xf32, #tpu.memory_space<vmem>>, vector<1x256xf32>
      %14 = vector.broadcast %13 : vector<1x256xf32> to vector<16x256xf32>
      %15 = arith.addf %12, %14 : vector<16x256xf32>
      %c0_14 = arith.constant 0 : index
      %c0_15 = arith.constant 0 : index
      %16 = vector.load %arg6[%c0_14, %c0_15] : memref<16x256xf32, #tpu.memory_space<vmem>>, vector<16x256xf32>
      tpu.vector_store %arg6[%c0_14, %c0_15], %15 {strides = array<i32>} : memref<16x256xf32, #tpu.memory_space<vmem>>, vector<16x256xf32>,
    } else {
    }
    return
  }
  func.func @transform_0(%arg0: i32, %arg1: i32, %arg2: i32) -> (i32, i32) {
    %c0_i32 = arith.constant 0 : i32
    return %arg0, %arg2 : i32, i32
  }
  func.func @transform_1(%arg0: i32, %arg1: i32, %arg2: i32) -> (i32, i32) {
    %c0_i32 = arith.constant 0 : i32
    return %arg2, %arg1 : i32, i32
  }
  func.func @transform_2(%arg0: i32, %arg1: i32, %arg2: i32) -> (i32, i32) {
    %c0_i32 = arith.constant 0 : i32
    %c0_i32_0 = arith.constant 0 : i32
    return %c0_i32, %arg1 : i32, i32
  }
  func.func @transform_3(%arg0: i32, %arg1: i32, %arg2: i32) -> (i32, i32) {
    %c0_i32 = arith.constant 0 : i32
    return %arg0, %arg1 : i32, i32
  }
}

</mosaic_0001>

<llo_original>
// kernel: _linear_forward.1
$region0: #{_linear_forward.1}
  #allocation0 [shape = 'u32[]', space=smem, size = 0x4, offset = 0x4, fixed_abs, tag = 'smem constant byte address 0x4 - core index']
  #allocation1 [shape = 'u32[144,128]{1,0:T(1,128)}', space=vmem, size = 0x12000, scoped, tag = 'internal scratch']
  #allocation2 [shape = 'f32[16,256]{1,0:T(8,128)}', space=vmem, size = 0x4000, scoped, tag = 'scratch operand']
  %s0 = inlined_call_operand.vmem [shape: bf16[16,256], index: 0, kind: input, shape index: {}]
  %s1 = inlined_call_operand.hbm [shape: bf16[256,256], index: 1, kind: input, shape index: {}]
  %s2 = inlined_call_operand.vmem [shape: f32[1,256], index: 2, kind: input, shape index: {}]
  %s3 = inlined_call_operand.hbm [shape: f32[16,256], index: 3, kind: output, shape index: {}]
  %s4 = sld [smem:[#allocation0]]
  $region34: #{_linear_forward.1} parent=0
    _
  %s6 = ssub.s32 1, %s4
  %s7 = scalar_select 0, %s6, %s4
  $region1: #{_linear_forward.1} parent=0
    #allocation3 [shape = 'u8[131072]{0}', space=vmem, size = 0x20000, scoped, tag = 'input window, operand 1, single buffered']
    #allocation4 [shape = 's32[1]{0}', space=sflag, size = 0x4, scoped, tag = 'scoped memory for _linear_forward.1']
    #allocation5 [shape = 's32[1]{0}', space=sflag, size = 0x4, scoped, tag = 'scoped memory for _linear_forward.1']
    #allocation6 [shape = 'u8[16384]{0}', space=vmem, size = 0x4000, scoped, tag = 'output window, operand 0, single buffered']
    %8 = vsyncpa [#allocation4], 0
    %9 = vsyncpa [#allocation5], 0
    // Predicated region
    $region2: #{_linear_forward.1} parent=1 // pred_check
      _
    $region3: #{_linear_forward.1} parent=1 // pred_check_branch
      %11 = sbr.rel (0) target = $region5
    $region4: #{_linear_forward.1} parent=1 // pred_region
      _
    $region5: #{_linear_forward.1} parent=1 // pred_fallthru
      _
    // Predicated region
    $region6: #{_linear_forward.1} parent=1 // pred_check
      _
    $region7: #{_linear_forward.1} parent=1 // pred_check_branch
      %13 = sbr.rel (0) target = $region9
    $region8: #{_linear_forward.1} parent=1 // pred_region
      %s15 = ssub.s32 4096, 4096
      %16 = vsyncadd [#allocation4], %s15
      %s17 = sshll.u32 [#allocation3], 4
      %s18 = int_to_ptr.vmem [resolvable:$true] %s17
      %23 = dma.hbm_to_vmem [thread:$0]  %s1, 4096, %s18, [#allocation4], 128, 128, 8
    $region9: #{_linear_forward.1} parent=1 // pred_fallthru
      _
    // Predicated region
    $region10: #{_linear_forward.1} parent=1 // pred_check
      _
    $region11: #{_linear_forward.1} parent=1 // pred_check_branch
      %25 = sbr.rel (0) target = $region13
    $region12: #{_linear_forward.1} parent=1 // pred_region
      _
    $region13: #{_linear_forward.1} parent=1 // pred_fallthru
      _
    // Predicated region
    $region14: #{_linear_forward.1} parent=1 // pred_check
      _
    $region15: #{_linear_forward.1} parent=1 // pred_check_branch
      %27 = sbr.rel (0) target = $region17
    $region16: #{_linear_forward.1} parent=1 // pred_region
      %28 = dma.done [#allocation4], 4096
    $region17: #{_linear_forward.1} parent=1 // pred_fallthru
      _
    %p29 = scmp.eq.s32.totalorder 0, 0
    // Predicated region
    $region18: #{_linear_forward.1} parent=1 // pred_check
      %p30 = pneg %p29
    $region19: #{_linear_forward.1} parent=1 // pred_check_branch
      %32 = sbr.rel (%p30) target = $region21
    $region20: #{_linear_forward.1} parent=1 // pred_region
      %33 = vst [vmem:[#allocation2] sm:$0xff] 0.0
      %34 = vst [vmem:[#allocation2 + $0x8] sm:$0xff] 0.0
      %35 = vst [vmem:[#allocation2 + $0x10] sm:$0xff] 0.0
      %36 = vst [vmem:[#allocation2 + $0x18] sm:$0xff] 0.0
    $region21: #{_linear_forward.1} parent=1 // pred_fallthru
      _
    %v37 = vld [vmem:[#allocation2] sm:$0xff]
    %v38 = vld [vmem:[#allocation2 + $0x8] sm:$0xff]
    %v39 = vld [vmem:[#allocation2 + $0x10] sm:$0xff]
    %v40 = vld [vmem:[#allocation2 + $0x18] sm:$0xff]
    %v41 = vld [vmem:[%s0] sm:$0xff]
    %v42 = vld [vmem:[%s0 + $0x8] sm:$0xff]
    %v43 = vld [vmem:[#allocation3] sm:$0xff]
    %v44 = vld [vmem:[#allocation3 + $0x8] sm:$0xff]
    %v45 = vld [vmem:[#allocation3 + $0x10] sm:$0xff]
    %v46 = vld [vmem:[#allocation3 + $0x18] sm:$0xff]
    %v47 = vld [vmem:[#allocation3 + $0x20] sm:$0xff]
    %v48 = vld [vmem:[#allocation3 + $0x28] sm:$0xff]
    %v49 = vld [vmem:[#allocation3 + $0x30] sm:$0xff]
    %v50 = vld [vmem:[#allocation3 + $0x38] sm:$0xff]
    %v51 = vld [vmem:[#allocation3 + $0x40] sm:$0xff]
    %v52 = vld [vmem:[#allocation3 + $0x48] sm:$0xff]
    %v53 = vld [vmem:[#allocation3 + $0x50] sm:$0xff]
    %v54 = vld [vmem:[#allocation3 + $0x58] sm:$0xff]
    %v55 = vld [vmem:[#allocation3 + $0x60] sm:$0xff]
    %v56 = vld [vmem:[#allocation3 + $0x68] sm:$0xff]
    %v57 = vld [vmem:[#allocation3 + $0x70] sm:$0xff]
    %v58 = vld [vmem:[#allocation3 + $0x78] sm:$0xff]
    %v59 = vld [vmem:[#allocation3 + $0x80] sm:$0xff]
    %v60 = vld [vmem:[#allocation3 + $0x88] sm:$0xff]
    %v61 = vld [vmem:[#allocation3 + $0x90] sm:$0xff]
    %v62 = vld [vmem:[#allocation3 + $0x98] sm:$0xff]
    %v63 = vld [vmem:[#allocation3 + $0xa0] sm:$0xff]
    %v64 = vld [vmem:[#allocation3 + $0xa8] sm:$0xff]
    %v65 = vld [vmem:[#allocation3 + $0xb0] sm:$0xff]
    %v66 = vld [vmem:[#allocation3 + $0xb8] sm:$0xff]
    %v67 = vld [vmem:[#allocation3 + $0xc0] sm:$0xff]
    %v68 = vld [vmem:[#allocation3 + $0xc8] sm:$0xff]
    %v69 = vld [vmem:[#allocation3 + $0xd0] sm:$0xff]
    %v70 = vld [vmem:[#allocation3 + $0xd8] sm:$0xff]
    %v71 = vld [vmem:[#allocation3 + $0xe0] sm:$0xff]
    %v72 = vld [vmem:[#allocation3 + $0xe8] sm:$0xff]
    %v73 = vld [vmem:[#allocation3 + $0xf0] sm:$0xff]
    %v74 = vld [vmem:[#allocation3 + $0xf8] sm:$0xff]
    %v77 = vunpack.c.l.b16 %v41
    %v78 = vunpack.c.h.b16 %v41
    %v79 = vunpack.c.l.b16 %v42
    %v80 = vunpack.c.h.b16 %v42
    %v81 = vpack.c.b16 %v79, %v77
    %v82 = vpack.c.b16 %v80, %v78
    %v117 = vunpack.c.l.b16 %v43
    %v118 = vunpack.c.h.b16 %v43
    %v119 = vunpack.c.l.b16 %v44
    %v120 = vunpack.c.h.b16 %v44
    %v121 = vunpack.c.l.b16 %v45
    %v122 = vunpack.c.h.b16 %v45
    %v123 = vunpack.c.l.b16 %v46
    %v124 = vunpack.c.h.b16 %v46
    %v125 = vunpack.c.l.b16 %v47
    %v126 = vunpack.c.h.b16 %v47
    %v127 = vunpack.c.l.b16 %v48
    %v128 = vunpack.c.h.b16 %v48
    %v129 = vunpack.c.l.b16 %v49
    %v130 = vunpack.c.h.b16 %v49
    %v131 = vunpack.c.l.b16 %v50
    %v132 = vunpack.c.h.b16 %v50
    %v133 = vunpack.c.l.b16 %v51
    %v134 = vunpack.c.h.b16 %v51
    %v135 = vunpack.c.l.b16 %v52
    %v136 = vunpack.c.h.b16 %v52
    %v137 = vunpack.c.l.b16 %v53
    %v138 = vunpack.c.h.b16 %v53
    %v139 = vunpack.c.l.b16 %v54
    %v140 = vunpack.c.h.b16 %v54
    %v141 = vunpack.c.l.b16 %v55
    %v142 = vunpack.c.h.b16 %v55
    %v143 = vunpack.c.l.b16 %v56
    %v144 = vunpack.c.h.b16 %v56
    %v145 = vunpack.c.l.b16 %v57
    %v146 = vunpack.c.h.b16 %v57
    %v147 = vunpack.c.l.b16 %v58
    %v148 = vunpack.c.h.b16 %v58
    %v149 = vunpack.c.l.b16 %v59
    %v150 = vunpack.c.h.b16 %v59
    %v151 = vunpack.c.l.b16 %v60
    %v152 = vunpack.c.h.b16 %v60
    %v153 = vunpack.c.l.b16 %v61
    %v154 = vunpack.c.h.b16 %v61
    %v155 = vunpack.c.l.b16 %v62
    %v156 = vunpack.c.h.b16 %v62
    %v157 = vunpack.c.l.b16 %v63
    %v158 = vunpack.c.h.b16 %v63
    %v159 = vunpack.c.l.b16 %v64
    %v160 = vunpack.c.h.b16 %v64
    %v161 = vunpack.c.l.b16 %v65
    %v162 = vunpack.c.h.b16 %v65
    %v163 = vunpack.c.l.b16 %v66
    %v164 = vunpack.c.h.b16 %v66
    %v165 = vunpack.c.l.b16 %v67
    %v166 = vunpack.c.h.b16 %v67
    %v167 = vunpack.c.l.b16 %v68
    %v168 = vunpack.c.h.b16 %v68
    %v169 = vunpack.c.l.b16 %v69
    %v170 = vunpack.c.h.b16 %v69
    %v171 = vunpack.c.l.b16 %v70
    %v172 = vunpack.c.h.b16 %v70
    %v173 = vunpack.c.l.b16 %v71
    %v174 = vunpack.c.h.b16 %v71
    %v175 = vunpack.c.l.b16 %v72
    %v176 = vunpack.c.h.b16 %v72
    %v177 = vunpack.c.l.b16 %v73
    %v178 = vunpack.c.h.b16 %v73
    %v179 = vunpack.c.l.b16 %v74
    %v180 = vunpack.c.h.b16 %v74
    %v181 = vpack.c.b16 %v119, %v117
    %v182 = vpack.c.b16 %v120, %v118
    %v183 = vpack.c.b16 %v123, %v121
    %v184 = vpack.c.b16 %v124, %v122
    %v185 = vpack.c.b16 %v127, %v125
    %v186 = vpack.c.b16 %v128, %v126
    %v187 = vpack.c.b16 %v131, %v129
    %v188 = vpack.c.b16 %v132, %v130
    %v189 = vpack.c.b16 %v135, %v133
    %v190 = vpack.c.b16 %v136, %v134
    %v191 = vpack.c.b16 %v139, %v137
    %v192 = vpack.c.b16 %v140, %v138
    %v193 = vpack.c.b16 %v143, %v141
    %v194 = vpack.c.b16 %v144, %v142
    %v195 = vpack.c.b16 %v147, %v145
    %v196 = vpack.c.b16 %v148, %v146
    %v197 = vpack.c.b16 %v151, %v149
    %v198 = vpack.c.b16 %v152, %v150
    %v199 = vpack.c.b16 %v155, %v153
    %v200 = vpack.c.b16 %v156, %v154
    %v201 = vpack.c.b16 %v159, %v157
    %v202 = vpack.c.b16 %v160, %v158
    %v203 = vpack.c.b16 %v163, %v161
    %v204 = vpack.c.b16 %v164, %v162
    %v205 = vpack.c.b16 %v167, %v165
    %v206 = vpack.c.b16 %v168, %v166
    %v207 = vpack.c.b16 %v171, %v169
    %v208 = vpack.c.b16 %v172, %v170
    %v209 = vpack.c.b16 %v175, %v173
    %v210 = vpack.c.b16 %v176, %v174
    %v211 = vpack.c.b16 %v179, %v177
    %v212 = vpack.c.b16 %v180, %v178
    %245 = vmatprep.subr.bf16.mxu0 %v182
    %246 = vmatpush1.bf16.msra.mxu0 %v181
    %247 = vmatprep.subr.bf16.mxu0 %v184
    %248 = vmatpush1.bf16.msra.mxu0 %v183
    %249 = vmatprep.subr.bf16.mxu0 %v186
    %250 = vmatpush1.bf16.msra.mxu0 %v185
    %251 = vmatprep.subr.bf16.mxu0 %v188
    %252 = vmatpush1.bf16.msra.mxu0 %v187
    %253 = vmatprep.subr.bf16.mxu0 %v190
    %254 = vmatpush1.bf16.msra.mxu0 %v189
    %255 = vmatprep.subr.bf16.mxu0 %v192
    %256 = vmatpush1.bf16.msra.mxu0 %v191
    %257 = vmatprep.subr.bf16.mxu0 %v194
    %258 = vmatpush1.bf16.msra.mxu0 %v193
    %259 = vmatprep.subr.bf16.mxu0 %v196
    %260 = vmatpush1.bf16.msra.mxu0 %v195
    %261 = vmatprep.subr.bf16.mxu0 %v198
    %262 = vmatpush1.bf16.msra.mxu0 %v197
    %263 = vmatprep.subr.bf16.mxu0 %v200
    %264 = vmatpush1.bf16.msra.mxu0 %v199
    %265 = vmatprep.subr.bf16.mxu0 %v202
    %266 = vmatpush1.bf16.msra.mxu0 %v201
    %267 = vmatprep.subr.bf16.mxu0 %v204
    %268 = vmatpush1.bf16.msra.mxu0 %v203
    %269 = vmatprep.subr.bf16.mxu0 %v206
    %270 = vmatpush1.bf16.msra.mxu0 %v205
    %271 = vmatprep.subr.bf16.mxu0 %v208
    %272 = vmatpush1.bf16.msra.mxu0 %v207
    %273 = vmatprep.subr.bf16.mxu0 %v210
    %274 = vmatpush1.bf16.msra.mxu0 %v209
    %275 = vmatprep.subr.bf16.mxu0 %v212
    %276 = vmatpush1.bf16.msra.mxu0 %v211
    %277 = vmatprep.mubr.bf16.mxu0 %v82
    %278 = vmatmul.mubr.bf16.gmra.mrb[0].mxu0 %v81
    %v279 = vpop.f32.mrb[0].mxu0
    %v280 = vadd.f32 0.0, %v279
    %v281 = vpop.f32.mrb[0].mxu0
    %v282 = vadd.f32 0.0, %v281
    %v283 = vpop.f32.mrb[0].mxu0
    %v284 = vadd.f32 0.0, %v283
    %v285 = vpop.f32.mrb[0].mxu0
    %v286 = vadd.f32 0.0, %v285
    %287 = vdwg.mxu0
    %v288 = vadd.f32 %v37, %v280
    %v289 = vadd.f32 %v38, %v282
    %v290 = vadd.f32 %v39, %v284
    %v291 = vadd.f32 %v40, %v286
    %292 = vst [vmem:[#allocation2] sm:$0xff] %v288
    %293 = vst [vmem:[#allocation2 + $0x8] sm:$0xff] %v289
    %294 = vst [vmem:[#allocation2 + $0x10] sm:$0xff] %v290
    %295 = vst [vmem:[#allocation2 + $0x18] sm:$0xff] %v291
    // Predicated region
    $region22: #{_linear_forward.1} parent=1 // pred_check
      %p296 = pneg %p29
    $region23: #{_linear_forward.1} parent=1 // pred_check_branch
      %298 = sbr.rel (%p296) target = $region25
    $region24: #{_linear_forward.1} parent=1 // pred_region
      %v299 = vld [vmem:[#allocation2] sm:$0xff]
      %v300 = vld [vmem:[#allocation2 + $0x8] sm:$0xff]
      %v301 = vld [vmem:[#allocation2 + $0x10] sm:$0xff]
      %v302 = vld [vmem:[#allocation2 + $0x18] sm:$0xff]
      %v303 = vld [vmem:[%s2] sm:$0x3]
      %v305 = vlaneseq
      %v306 = vshrl.u32 %v305, 7
      %v307 = vsub.s32 0, %v306
      %v308 = vrot.slane %v303, %v307
      %v309 = vlaneseq
      %v310 = vshrl.u32 %v309, 7
      %v311 = vsub.s32 1, %v310
      %v312 = vrot.slane %v303, %v311
      %v315 = vadd.f32 %v299, %v308
      %v316 = vadd.f32 %v300, %v312
      %v317 = vadd.f32 %v301, %v308
      %v318 = vadd.f32 %v302, %v312
      %319 = vst [vmem:[#allocation6] sm:$0xff] %v315
      %320 = vst [vmem:[#allocation6 + $0x8] sm:$0xff] %v316
      %321 = vst [vmem:[#allocation6 + $0x10] sm:$0xff] %v317
      %322 = vst [vmem:[#allocation6 + $0x18] sm:$0xff] %v318
    $region25: #{_linear_forward.1} parent=1 // pred_fallthru
      _
    // Predicated region
    $region26: #{_linear_forward.1} parent=1 // pred_check
      _
    $region27: #{_linear_forward.1} parent=1 // pred_check_branch
      %324 = sbr.rel (0) target = $region29
    $region28: #{_linear_forward.1} parent=1 // pred_region
      %s326 = ssub.s32 512, 512
      %327 = vsyncadd [#allocation5], %s326
      %s328 = sshll.u32 [#allocation6], 4
      %s329 = int_to_ptr.vmem [resolvable:$true] %s328
      %334 = dma.vmem_to_hbm [thread:$0]  %s329, 512, %s3, [#allocation5], 256, 256, 16
    $region29: #{_linear_forward.1} parent=1 // pred_fallthru
      _
    // Predicated region
    $region30: #{_linear_forward.1} parent=1 // pred_check
      _
    $region31: #{_linear_forward.1} parent=1 // pred_check_branch
      %336 = sbr.rel (0) target = $region33
    $region32: #{_linear_forward.1} parent=1 // pred_region
      %337 = dma.done [#allocation5], 512
    $region33: #{_linear_forward.1} parent=1 // pred_fallthru
      _
    %338 = vsyncpa [#allocation4], 1
    %339 = vsyncpa [#allocation5], 1

</llo_original>
